<compile_context>
chip_gen: v7x
topology: tpu7x:2x2x1
jax: 0.10.0
libtpu: 0.0.40
codegen_flags: <defaults>
</compile_context>

<pallas_src>
import jax
import jax.numpy as jnp
from jax.experimental import pallas as pl
from jax.experimental.pallas import tpu as pltpu


def mlp_enzymes_kernel(xt_ref, w1_ref, b1_ref, w2_ref, b2_ref, w3_ref, b3_ref,
                       ot_ref):
    # xt: (23, tm) f32, batch on the lane axis.
    xt = xt_ref[...]

    # Layer 1: Linear(23 -> 30) + ReLU, feature-major.
    h1 = jnp.dot(w1_ref[...], xt, preferred_element_type=jnp.float32)
    h1 = jnp.maximum(h1 + b1_ref[...], 0.0)            # (30, tm)

    # Layer 2: Linear(30 -> 10) + ReLU.
    h2 = jnp.dot(w2_ref[...], h1, preferred_element_type=jnp.float32)
    h2 = jnp.maximum(h2 + b2_ref[...], 0.0)             # (10, tm)

    # Output head: Linear(10 -> 2), no activation.  Lane-dense store.
    ot = jnp.dot(w3_ref[...], h2, preferred_element_type=jnp.float32)
    ot_ref[...] = (ot + b3_ref[...]).astype(ot_ref.dtype)   # (2, tm)


def _round_up(n, m):
    return ((n + m - 1) // m) * m


def mlp_enzymes_forward_feature_major(xt, params, *, tile_m=16384):
    """Feature-major entry point. xt: [23, B] f32 -> [2, B] f32."""
    w1, b1, w2, b2, w3, b3 = (params["w1"], params["b1"], params["w2"],
                              params["b2"], params["w3"], params["b3"])
    F, B = xt.shape
    assert F == 23, F

    # Batch tile on the lane axis: multiple of 128, large enough to amortize
    # per-grid-step overhead, capped so the grid has >= 2 steps (v7x megacore).
    tm = max(128, min(tile_m, _round_up((B + 1) // 2, 128)))
    grid = (pl.cdiv(B, tm),)

    weight_bytes = 4 * (w1.size + b1.size + w2.size + b2.size
                        + w3.size + b3.size)
    cost = pl.CostEstimate(
        flops=2 * B * (23 * 30 + 30 * 10 + 10 * 2),
        transcendentals=0,
        bytes_accessed=B * (23 + 2) * 4 + weight_bytes,
    )

    def batch_map(i):   # x / out: tiled over the batch grid axis
        return (0, i)

    def const_map(i):   # weights / biases: resident, fetched once
        return (0, 0)

    return pl.pallas_call(
        mlp_enzymes_kernel,
        out_shape=jax.ShapeDtypeStruct((2, B), jnp.float32),
        grid=grid,
        in_specs=[
            pl.BlockSpec((23, tm), batch_map),
            pl.BlockSpec(w1.shape, const_map),
            pl.BlockSpec(b1.shape, const_map),
            pl.BlockSpec(w2.shape, const_map),
            pl.BlockSpec(b2.shape, const_map),
            pl.BlockSpec(w3.shape, const_map),
            pl.BlockSpec(b3.shape, const_map),
        ],
        out_specs=pl.BlockSpec((2, tm), batch_map),
        compiler_params=pltpu.CompilerParams(
            dimension_semantics=("parallel",)),
        cost_estimate=cost,
    )(xt, w1, b1, w2, b2, w3, b3)


def mlp_enzymes_forward(x, params, *, tile_m=16384):
    """PyTorch-layout entry point: x [B, 23] f32 -> [B, 2] f32.

    The transposes here are pure layout plumbing to match nn.Module I/O;
    feature-major producers/consumers should call
    mlp_enzymes_forward_feature_major directly.
    """
    ot = mlp_enzymes_forward_feature_major(x.T, params, tile_m=tile_m)
    return ot.T


def init_params(key):
    """Deterministic init matching PyTorch nn.Linear.

    Weights kept in PyTorch's [out, in] layout (what the feature-major kernel
    wants directly); biases stored as [out, 1] columns.
    """
    def linear_init(k, fan_in, fan_out):
        kw, kb = jax.random.split(k)
        bound = 1.0 / jnp.sqrt(fan_in)
        w = jax.random.uniform(kw, (fan_out, fan_in), jnp.float32,
                               minval=-bound, maxval=bound)
        b = jax.random.uniform(kb, (fan_out, 1), jnp.float32,
                               minval=-bound, maxval=bound)
        return w, b

    k1, k2, k3 = jax.random.split(key, 3)
    w1, b1 = linear_init(k1, 23, 30)
    w2, b2 = linear_init(k2, 30, 10)
    w3, b3 = linear_init(k3, 10, 2)
    return dict(w1=w1, b1=b1, w2=w2, b2=b2, w3=w3, b3=b3)


def reference_forward(x, params):
    h1 = jnp.maximum(x @ params["w1"].T + params["b1"].T, 0.0)
    h2 = jnp.maximum(h1 @ params["w2"].T + params["b2"].T, 0.0)
    return h2 @ params["w3"].T + params["b3"].T


if __name__ == "__main__":
    key = jax.random.PRNGKey(0)
    k_x, k_p = jax.random.split(key)
    params = init_params(k_p)

    # Even case: B a multiple of the 128-lane tile (grid = 2 full blocks).
    B = 256
    x = jax.random.normal(k_x, (B, 23), jnp.float32)
    out = jax.block_until_ready(mlp_enzymes_forward(x, params))
    ref = reference_forward(x, params)
    assert out.shape == (B, 2), out.shape
    # TPU matmuls at default precision use bf16 passes internally; the kernel
    # and the jnp reference both see this but with different operand layouts,
    # so allow a small tolerance.
    assert jnp.allclose(out, ref, atol=2e-2, rtol=2e-2), "mismatch (even B)"

    # Ragged case: exercises the partial last lane-block (clipped writes,
    # garbage-but-unused padding lanes).
    B2 = 200
    x2 = jax.random.normal(k_x, (B2, 23), jnp.float32)
    out2 = jax.block_until_ready(mlp_enzymes_forward(x2, params))
    ref2 = reference_forward(x2, params)
    assert out2.shape == (B2, 2), out2.shape
    assert jnp.allclose(out2, ref2, atol=2e-2, rtol=2e-2), "mismatch (ragged B)"

    print("KERNEL_OK")
</pallas_src>

<mosaic_0001>
module attributes {stable_mosaic.version = 11 : i64} {
  func.func @mlp_enzymes_kernel(%arg0: i32, %arg1: memref<23x128xf32, #tpu.memory_space<vmem>>, %arg2: memref<30x23xf32, #tpu.memory_space<vmem>>, %arg3: memref<30x1xf32, #tpu.memory_space<vmem>>, %arg4: memref<10x30xf32, #tpu.memory_space<vmem>>, %arg5: memref<10x1xf32, #tpu.memory_space<vmem>>, %arg6: memref<2x10xf32, #tpu.memory_space<vmem>>, %arg7: memref<2x1xf32, #tpu.memory_space<vmem>>, %arg8: memref<2x128xf32, #tpu.memory_space<vmem>>) attributes {dimension_semantics = [#tpu.dimension_semantics<parallel>], iteration_bounds = array<i64: 2>, scalar_prefetch = 0 : i64, scratch_operands = 0 : i64, tpu.core_type = #tpu.core_type<tc>, window_params = [{transform_indices = @transform_0, window_bounds = array<i64: 23, 128>}, {pipeline_mode = #tpu.pipeline_mode<synchronous>, transform_indices = @transform_1, window_bounds = array<i64: 30, 23>}, {pipeline_mode = #tpu.pipeline_mode<synchronous>, transform_indices = @transform_2, window_bounds = array<i64: 30, 1>}, {pipeline_mode = #tpu.pipeline_mode<synchronous>, transform_indices = @transform_3, window_bounds = array<i64: 10, 30>}, {pipeline_mode = #tpu.pipeline_mode<synchronous>, transform_indices = @transform_4, window_bounds = array<i64: 10, 1>}, {pipeline_mode = #tpu.pipeline_mode<synchronous>, transform_indices = @transform_5, window_bounds = array<i64: 2, 10>}, {pipeline_mode = #tpu.pipeline_mode<synchronous>, transform_indices = @transform_6, window_bounds = array<i64: 2, 1>}, {transform_indices = @transform_7, window_bounds = array<i64: 2, 128>}]} {
    %c0 = arith.constant 0 : index
    %c0_0 = arith.constant 0 : index
    %0 = vector.load %arg1[%c0, %c0_0] : memref<23x128xf32, #tpu.memory_space<vmem>>, vector<23x128xf32>
    %c0_1 = arith.constant 0 : index
    %c0_2 = arith.constant 0 : index
    %1 = vector.load %arg2[%c0_1, %c0_2] : memref<30x23xf32, #tpu.memory_space<vmem>>, vector<30x23xf32>
    %cst = arith.constant dense<0.000000e+00> : vector<30x128xf32>
    %2 = tpu.matmul %1, %0, %cst {dimension_numbers = #tpu.dot_dimension_numbers<[1], [0], [0], [1], [0, 0, 1, 1], [], []>} : vector<30x23xf32>, vector<23x128xf32>, vector<30x128xf32> -> vector<30x128xf32>
    %c0_3 = arith.constant 0 : index
    %c0_4 = arith.constant 0 : index
    %3 = vector.load %arg3[%c0_3, %c0_4] : memref<30x1xf32, #tpu.memory_space<vmem>>, vector<30x1xf32>
    %4 = vector.broadcast %3 : vector<30x1xf32> to vector<30x128xf32>
    %5 = arith.addf %2, %4 : vector<30x128xf32>
    %cst_5 = arith.constant 0.000000e+00 : f32
    %6 = vector.broadcast %cst_5 : f32 to vector<30x128xf32>
    %7 = arith.maximumf %5, %6 : vector<30x128xf32>
    %c0_6 = arith.constant 0 : index
    %c0_7 = arith.constant 0 : index
    %8 = vector.load %arg4[%c0_6, %c0_7] : memref<10x30xf32, #tpu.memory_space<vmem>>, vector<10x30xf32>
    %cst_8 = arith.constant dense<0.000000e+00> : vector<10x128xf32>
    %9 = tpu.matmul %8, %7, %cst_8 {dimension_numbers = #tpu.dot_dimension_numbers<[1], [0], [0], [1], [0, 0, 1, 1], [], []>} : vector<10x30xf32>, vector<30x128xf32>, vector<10x128xf32> -> vector<10x128xf32>
    %c0_9 = arith.constant 0 : index
    %c0_10 = arith.constant 0 : index
    %10 = vector.load %arg5[%c0_9, %c0_10] : memref<10x1xf32, #tpu.memory_space<vmem>>, vector<10x1xf32>
    %11 = vector.broadcast %10 : vector<10x1xf32> to vector<10x128xf32>
    %12 = arith.addf %9, %11 : vector<10x128xf32>
    %cst_11 = arith.constant 0.000000e+00 : f32
    %13 = vector.broadcast %cst_11 : f32 to vector<10x128xf32>
    %14 = arith.maximumf %12, %13 : vector<10x128xf32>
    %c0_12 = arith.constant 0 : index
    %c0_13 = arith.constant 0 : index
    %15 = vector.load %arg6[%c0_12, %c0_13] : memref<2x10xf32, #tpu.memory_space<vmem>>, vector<2x10xf32>
    %cst_14 = arith.constant dense<0.000000e+00> : vector<2x128xf32>
    %16 = tpu.matmul %15, %14, %cst_14 {dimension_numbers = #tpu.dot_dimension_numbers<[1], [0], [0], [1], [0, 0, 1, 1], [], []>} : vector<2x10xf32>, vector<10x128xf32>, vector<2x128xf32> -> vector<2x128xf32>
    %c0_15 = arith.constant 0 : index
    %c0_16 = arith.constant 0 : index
    %17 = vector.load %arg7[%c0_15, %c0_16] : memref<2x1xf32, #tpu.memory_space<vmem>>, vector<2x1xf32>
    %18 = vector.broadcast %17 : vector<2x1xf32> to vector<2x128xf32>
    %19 = arith.addf %16, %18 : vector<2x128xf32>
    %c0_17 = arith.constant 0 : index
    %c0_18 = arith.constant 0 : index
    %20 = vector.load %arg8[%c0_17, %c0_18] : memref<2x128xf32, #tpu.memory_space<vmem>>, vector<2x128xf32>
    tpu.vector_store %arg8[%c0_17, %c0_18], %19 {strides = array<i32>} : memref<2x128xf32, #tpu.memory_space<vmem>>, vector<2x128xf32>,
    return
  }
  func.func @transform_0(%arg0: i32) -> (i32, i32) {
    %c0_i32 = arith.constant 0 : i32
    %c0_i32_0 = arith.constant 0 : i32
    return %c0_i32, %arg0 : i32, i32
  }
  func.func @transform_1(%arg0: i32) -> (i32, i32) {
    %c0_i32 = arith.constant 0 : i32
    %c0_i32_0 = arith.constant 0 : i32
    %c0_i32_1 = arith.constant 0 : i32
    return %c0_i32, %c0_i32_0 : i32, i32
  }
  func.func @transform_2(%arg0: i32) -> (i32, i32) {
    %c0_i32 = arith.constant 0 : i32
    %c0_i32_0 = arith.constant 0 : i32
    %c0_i32_1 = arith.constant 0 : i32
    return %c0_i32, %c0_i32_0 : i32, i32
  }
  func.func @transform_3(%arg0: i32) -> (i32, i32) {
    %c0_i32 = arith.constant 0 : i32
    %c0_i32_0 = arith.constant 0 : i32
    %c0_i32_1 = arith.constant 0 : i32
    return %c0_i32, %c0_i32_0 : i32, i32
  }
  func.func @transform_4(%arg0: i32) -> (i32, i32) {
    %c0_i32 = arith.constant 0 : i32
    %c0_i32_0 = arith.constant 0 : i32
    %c0_i32_1 = arith.constant 0 : i32
    return %c0_i32, %c0_i32_0 : i32, i32
  }
  func.func @transform_5(%arg0: i32) -> (i32, i32) {
    %c0_i32 = arith.constant 0 : i32
    %c0_i32_0 = arith.constant 0 : i32
    %c0_i32_1 = arith.constant 0 : i32
    return %c0_i32, %c0_i32_0 : i32, i32
  }
  func.func @transform_6(%arg0: i32) -> (i32, i32) {
    %c0_i32 = arith.constant 0 : i32
    %c0_i32_0 = arith.constant 0 : i32
    %c0_i32_1 = arith.constant 0 : i32
    return %c0_i32, %c0_i32_0 : i32, i32
  }
  func.func @transform_7(%arg0: i32) -> (i32, i32) {
    %c0_i32 = arith.constant 0 : i32
    %c0_i32_0 = arith.constant 0 : i32
    return %c0_i32, %arg0 : i32, i32
  }
}

</mosaic_0001>

<llo_original>
// kernel: tpu_custom_call.1
$region0: #{tpu_custom_call.1}
  #allocation0 [shape = 'u32[]', space=smem, size = 0x4, offset = 0x4, fixed_abs, tag = 'smem constant byte address 0x4 - core index']
  #allocation1 [shape = 'u32[144,128]{1,0:T(1,128)}', space=vmem, size = 0x12000, scoped, tag = 'internal scratch']
  %s0 = inlined_call_operand.vmem [shape: f32[23,256], index: 0, kind: input, shape index: {}]
  %s1 = inlined_call_operand.vmem [shape: f32[30,23], index: 1, kind: input, shape index: {}]
  %s2 = inlined_call_operand.vmem [shape: f32[30,1], index: 2, kind: input, shape index: {}]
  %s3 = inlined_call_operand.vmem [shape: f32[10,30], index: 3, kind: input, shape index: {}]
  %s4 = inlined_call_operand.vmem [shape: f32[10,1], index: 4, kind: input, shape index: {}]
  %s5 = inlined_call_operand.vmem [shape: f32[2,10], index: 5, kind: input, shape index: {}]
  %s6 = inlined_call_operand.vmem [shape: f32[2,1], index: 6, kind: input, shape index: {}]
  %s7 = inlined_call_operand.hbm [shape: f32[2,256], index: 7, kind: output, shape index: {}]
  %s8 = sld [smem:[#allocation0]]
  $region99: #{tpu_custom_call.1} parent=0
    _
  %s10 = ssub.s32 1, %s8
  %s11 = scalar_select 0, %s10, %s8
  $region1: #{tpu_custom_call.1} parent=0
    #allocation2 [shape = 'u8[24576]{0}', space=vmem, size = 0x6000, scoped, tag = 'input window, operand 0']
    #allocation3 [shape = 'u8[2048]{0}', space=vmem, size = 0x800, scoped, tag = 'output window, operand 0']
    #allocation4 [shape = 's32[2]{0}', space=sflag, size = 0x8, scoped, tag = 'scoped memory for tpu_custom_call.1']
    %12 = vsyncpa [#allocation4], 0
    %s13 = scalar_lea.sflag [#allocation4], 1
    %14 = vsyncpa %s13, 0
    loop: start=0, step=1, limit=4
    $region2: #{tpu_custom_call.1} parent=1 // loop_pre_header
      _
    $region3: #{tpu_custom_call.1} parent=1 // loop_header
      %s16 = sphi 0, %s20
      %p17 = scmp.ge.s32.totalorder %s16, 4
      %s26 = sphi 0, %s28
      %s29 = sphi 0, %s26
      %s30 = sphi 0, %s29
      %s46 = sphi 0, %s30
      %s50 = sphi 0, %s50
      %s52 = sphi 0, %s50
      %s53 = sphi 0, %s52
      %s67 = sphi 0, %s53
      %s71 = sphi 0, %s71
      %s73 = sphi 0, %s71
      %s74 = sphi 0, %s73
      %s88 = sphi 0, %s74
      %s92 = sphi 0, %s92
      %s94 = sphi 0, %s92
      %s95 = sphi 0, %s94
      %s109 = sphi 0, %s95
      %s113 = sphi 0, %s113
      %s115 = sphi 0, %s113
      %s116 = sphi 0, %s115
      %s130 = sphi 0, %s116
      %s134 = sphi 0, %s134
      %s136 = sphi 0, %s134
      %s137 = sphi 0, %s136
      %s151 = sphi 0, %s137
      %s155 = sphi 0, %s155
      %s157 = sphi 0, %s155
      %s158 = sphi 0, %s157
      %s172 = sphi 0, %s158
      %s178 = sphi 0, %s180
      %s181 = sphi 0, %s178
      %s182 = sphi 0, %s181
      %s198 = sphi 0, %s182
    $region4: #{tpu_custom_call.1} parent=1 // loop_header_branch
      %19 = sbr.rel (%p17) target = $region8
    $region5: #{tpu_custom_call.1} parent=1 // loop_body
      %s21 = ssub.s32 %s16, 1
      %s22 = ssub.s32 %s16, 2
      %s23 = sadd.s32 %s16, 1
      %s24 = ssub.s32 %s16, %s23
      %p25 = scmp.eq.s32.totalorder %s24, 0
      %s27 = sadd.s32 %s26, 1
      %s28 = scalar_select %p25, %s26, %s27
      %p31 = pneg %p25
      %p32 = scmp.eq.s32.totalorder %s16, 1
      %p33 = por %p31, %p32
      %p34 = scmp.ne.s32.totalorder %s26, %s29
      %p35 = scmp.eq.s32.totalorder %s16, 0
      %p36 = por %p34, %p35
      %p37 = scmp.ne.s32.totalorder %s26, %s29
      %p38 = scmp.eq.s32.totalorder %s21, 1
      %p39 = por %p37, %p38
      %p40 = scmp.ne.s32.totalorder %s29, %s30
      %p41 = scmp.eq.s32.totalorder %s21, 0
      %p42 = por %p40, %p41
      %p43 = scmp.ne.s32.totalorder %s29, %s30
      %p44 = scmp.eq.s32.totalorder %s22, 1
      %p45 = por %p43, %p44
      %p47 = scmp.ne.s32.totalorder %s30, %s46
      %p48 = scmp.eq.s32.totalorder %s22, 0
      %p49 = por %p47, %p48
      %s51 = sadd.s32 %s50, 1
      %p54 = scmp.eq.s32.totalorder %s16, 1
      %p55 = scmp.ne.s32.totalorder %s50, %s52
      %p56 = scmp.eq.s32.totalorder %s16, 0
      %p57 = por %p55, %p56
      %p58 = scmp.ne.s32.totalorder %s50, %s52
      %p59 = scmp.eq.s32.totalorder %s21, 1
      %p60 = por %p58, %p59
      %p61 = scmp.ne.s32.totalorder %s52, %s53
      %p62 = scmp.eq.s32.totalorder %s21, 0
      %p63 = por %p61, %p62
      %p64 = scmp.ne.s32.totalorder %s52, %s53
      %p65 = scmp.eq.s32.totalorder %s22, 1
      %p66 = por %p64, %p65
      %p68 = scmp.ne.s32.totalorder %s53, %s67
      %p69 = scmp.eq.s32.totalorder %s22, 0
      %p70 = por %p68, %p69
      %s72 = sadd.s32 %s71, 1
      %p75 = scmp.eq.s32.totalorder %s16, 1
      %p76 = scmp.ne.s32.totalorder %s71, %s73
      %p77 = scmp.eq.s32.totalorder %s16, 0
      %p78 = por %p76, %p77
      %p79 = scmp.ne.s32.totalorder %s71, %s73
      %p80 = scmp.eq.s32.totalorder %s21, 1
      %p81 = por %p79, %p80
      %p82 = scmp.ne.s32.totalorder %s73, %s74
      %p83 = scmp.eq.s32.totalorder %s21, 0
      %p84 = por %p82, %p83
      %p85 = scmp.ne.s32.totalorder %s73, %s74
      %p86 = scmp.eq.s32.totalorder %s22, 1
      %p87 = por %p85, %p86
      %p89 = scmp.ne.s32.totalorder %s74, %s88
      %p90 = scmp.eq.s32.totalorder %s22, 0
      %p91 = por %p89, %p90
      %s93 = sadd.s32 %s92, 1
      %p96 = scmp.eq.s32.totalorder %s16, 1
      %p97 = scmp.ne.s32.totalorder %s92, %s94
      %p98 = scmp.eq.s32.totalorder %s16, 0
      %p99 = por %p97, %p98
      %p100 = scmp.ne.s32.totalorder %s92, %s94
      %p101 = scmp.eq.s32.totalorder %s21, 1
      %p102 = por %p100, %p101
      %p103 = scmp.ne.s32.totalorder %s94, %s95
      %p104 = scmp.eq.s32.totalorder %s21, 0
      %p105 = por %p103, %p104
      %p106 = scmp.ne.s32.totalorder %s94, %s95
      %p107 = scmp.eq.s32.totalorder %s22, 1
      %p108 = por %p106, %p107
      %p110 = scmp.ne.s32.totalorder %s95, %s109
      %p111 = scmp.eq.s32.totalorder %s22, 0
      %p112 = por %p110, %p111
      %s114 = sadd.s32 %s113, 1
      %p117 = scmp.eq.s32.totalorder %s16, 1
      %p118 = scmp.ne.s32.totalorder %s113, %s115
      %p119 = scmp.eq.s32.totalorder %s16, 0
      %p120 = por %p118, %p119
      %p121 = scmp.ne.s32.totalorder %s113, %s115
      %p122 = scmp.eq.s32.totalorder %s21, 1
      %p123 = por %p121, %p122
      %p124 = scmp.ne.s32.totalorder %s115, %s116
      %p125 = scmp.eq.s32.totalorder %s21, 0
      %p126 = por %p124, %p125
      %p127 = scmp.ne.s32.totalorder %s115, %s116
      %p128 = scmp.eq.s32.totalorder %s22, 1
      %p129 = por %p127, %p128
      %p131 = scmp.ne.s32.totalorder %s116, %s130
      %p132 = scmp.eq.s32.totalorder %s22, 0
      %p133 = por %p131, %p132
      %s135 = sadd.s32 %s134, 1
      %p138 = scmp.eq.s32.totalorder %s16, 1
      %p139 = scmp.ne.s32.totalorder %s134, %s136
      %p140 = scmp.eq.s32.totalorder %s16, 0
      %p141 = por %p139, %p140
      %p142 = scmp.ne.s32.totalorder %s134, %s136
      %p143 = scmp.eq.s32.totalorder %s21, 1
      %p144 = por %p142, %p143
      %p145 = scmp.ne.s32.totalorder %s136, %s137
      %p146 = scmp.eq.s32.totalorder %s21, 0
      %p147 = por %p145, %p146
      %p148 = scmp.ne.s32.totalorder %s136, %s137
      %p149 = scmp.eq.s32.totalorder %s22, 1
      %p150 = por %p148, %p149
      %p152 = scmp.ne.s32.totalorder %s137, %s151
      %p153 = scmp.eq.s32.totalorder %s22, 0
      %p154 = por %p152, %p153
      %s156 = sadd.s32 %s155, 1
      %p159 = scmp.eq.s32.totalorder %s16, 1
      %p160 = scmp.ne.s32.totalorder %s155, %s157
      %p161 = scmp.eq.s32.totalorder %s16, 0
      %p162 = por %p160, %p161
      %p163 = scmp.ne.s32.totalorder %s155, %s157
      %p164 = scmp.eq.s32.totalorder %s21, 1
      %p165 = por %p163, %p164
      %p166 = scmp.ne.s32.totalorder %s157, %s158
      %p167 = scmp.eq.s32.totalorder %s21, 0
      %p168 = por %p166, %p167
      %p169 = scmp.ne.s32.totalorder %s157, %s158
      %p170 = scmp.eq.s32.totalorder %s22, 1
      %p171 = por %p169, %p170
      %p173 = scmp.ne.s32.totalorder %s158, %s172
      %p174 = scmp.eq.s32.totalorder %s22, 0
      %p175 = por %p173, %p174
      %s176 = ssub.s32 %s16, %s23
      %p177 = scmp.eq.s32.totalorder %s176, 0
      %s179 = sadd.s32 %s178, 1
      %s180 = scalar_select %p177, %s178, %s179
      %p183 = pneg %p177
      %p184 = scmp.eq.s32.totalorder %s16, 1
      %p185 = por %p183, %p184
      %p186 = scmp.ne.s32.totalorder %s178, %s181
      %p187 = scmp.eq.s32.totalorder %s16, 0
      %p188 = por %p186, %p187
      %p189 = scmp.ne.s32.totalorder %s178, %s181
      %p190 = scmp.eq.s32.totalorder %s21, 1
      %p191 = por %p189, %p190
      %p192 = scmp.ne.s32.totalorder %s181, %s182
      %p193 = scmp.eq.s32.totalorder %s21, 0
      %p194 = por %p192, %p193
      %p195 = scmp.ne.s32.totalorder %s181, %s182
      %p196 = scmp.eq.s32.totalorder %s22, 1
      %p197 = por %p195, %p196
      %p199 = scmp.ne.s32.totalorder %s182, %s198
      %p200 = scmp.eq.s32.totalorder %s22, 0
      %p201 = por %p199, %p200
      %p202 = scmp.le.s32.totalorder 1, %s16
      %p203 = scmp.lt.s32.totalorder %s16, 3
      %p204 = pnand %p202, %p203
      %p205 = pneg %p204
      // Predicated region
      $region9: #{tpu_custom_call.1} parent=5 // pred_check
        _
      $region10: #{tpu_custom_call.1} parent=5 // pred_check_branch
        %207 = sbr.rel (%p204) target = $region12
      $region11: #{tpu_custom_call.1} parent=5 // pred_region
        %s208 = ssub.s32 %s16, 1
        // Predicated region
        $region13: #{tpu_custom_call.1} parent=11 // pred_check
          %p209 = pneg %p63
        $region14: #{tpu_custom_call.1} parent=11 // pred_check_branch
          %211 = sbr.rel (%p209) target = $region16
        $region15: #{tpu_custom_call.1} parent=11 // pred_region
          _
        $region16: #{tpu_custom_call.1} parent=11 // pred_fallthru
          _
        // Predicated region
        $region17: #{tpu_custom_call.1} parent=11 // pred_check
          %p212 = pneg %p84
        $region18: #{tpu_custom_call.1} parent=11 // pred_check_branch
          %214 = sbr.rel (%p212) target = $region20
        $region19: #{tpu_custom_call.1} parent=11 // pred_region
          _
        $region20: #{tpu_custom_call.1} parent=11 // pred_fallthru
          _
        // Predicated region
        $region21: #{tpu_custom_call.1} parent=11 // pred_check
          %p215 = pneg %p105
        $region22: #{tpu_custom_call.1} parent=11 // pred_check_branch
          %217 = sbr.rel (%p215) target = $region24
        $region23: #{tpu_custom_call.1} parent=11 // pred_region
          _
        $region24: #{tpu_custom_call.1} parent=11 // pred_fallthru
          _
        // Predicated region
        $region25: #{tpu_custom_call.1} parent=11 // pred_check
          %p218 = pneg %p126
        $region26: #{tpu_custom_call.1} parent=11 // pred_check_branch
          %220 = sbr.rel (%p218) target = $region28
        $region27: #{tpu_custom_call.1} parent=11 // pred_region
          _
        $region28: #{tpu_custom_call.1} parent=11 // pred_fallthru
          _
        // Predicated region
        $region29: #{tpu_custom_call.1} parent=11 // pred_check
          %p221 = pneg %p147
        $region30: #{tpu_custom_call.1} parent=11 // pred_check_branch
          %223 = sbr.rel (%p221) target = $region32
        $region31: #{tpu_custom_call.1} parent=11 // pred_region
          _
        $region32: #{tpu_custom_call.1} parent=11 // pred_fallthru
          _
        // Predicated region
        $region33: #{tpu_custom_call.1} parent=11 // pred_check
          %p224 = pneg %p168
        $region34: #{tpu_custom_call.1} parent=11 // pred_check_branch
          %226 = sbr.rel (%p224) target = $region36
        $region35: #{tpu_custom_call.1} parent=11 // pred_region
          _
        $region36: #{tpu_custom_call.1} parent=11 // pred_fallthru
          _
      $region12: #{tpu_custom_call.1} parent=5 // pred_fallthru
        _
      %p227 = scmp.lt.s32.totalorder %s16, 2
      // Predicated region
      $region37: #{tpu_custom_call.1} parent=5 // pred_check
        %p228 = pneg %p227
      $region38: #{tpu_custom_call.1} parent=5 // pred_check_branch
        %230 = sbr.rel (%p228) target = $region40
      $region39: #{tpu_custom_call.1} parent=5 // pred_region
        // Predicated region
        $region41: #{tpu_custom_call.1} parent=39 // pred_check
          %p231 = pneg %p36
        $region42: #{tpu_custom_call.1} parent=39 // pred_check_branch
          %233 = sbr.rel (%p231) target = $region44
        $region43: #{tpu_custom_call.1} parent=39 // pred_region
          %s234 = sand.u32 %s26, 1
          %s235 = sand.u32 %s26, 1
          %s236 = smul.addr %s235, 24
          %s237 = scalar_lea.vmem [#allocation2], %s236
          %s238 = smul.addr %s16, 8
          %s239 = scalar_lea.vmem %s0, %s238
          // Predicated region
          $region45: #{tpu_custom_call.1} parent=43 // pred_check
            _
          $region46: #{tpu_custom_call.1} parent=43 // pred_check_branch
            %241 = sbr.rel (0) target = $region48
          $region47: #{tpu_custom_call.1} parent=43 // pred_region
            // Predicated region
            $region49: #{tpu_custom_call.1} parent=47 // pred_check
              _
            $region50: #{tpu_custom_call.1} parent=47 // pred_check_branch
              %243 = sbr.rel (0) target = $region52
            $region51: #{tpu_custom_call.1} parent=47 // pred_region
              // Predicated region
              $region64: #{tpu_custom_call.1} parent=51 // pred_check
                _
              $region65: #{tpu_custom_call.1} parent=51 // pred_check_branch
                %262 = sbr.rel (0) target = $region67
              $region66: #{tpu_custom_call.1} parent=51 // pred_region
                loop: start=0, step=1, limit=1
                $region68: #{tpu_custom_call.1} parent=66 // loop_pre_header
                  _
                $region69: #{tpu_custom_call.1} parent=66 // loop_header
                  %s264 = sphi 0, %s268
                  %p265 = scmp.ge.s32.totalorder %s264, 1
                  %s269 = sphi %s239, %s239
                  %s270 = sphi %s237, %s237
                $region70: #{tpu_custom_call.1} parent=66 // loop_header_branch
                  %267 = sbr.rel (%p265) target = $region74
                $region71: #{tpu_custom_call.1} parent=66 // loop_body
                  %v271 = vld [vmem:[%s269] sm:$0xff]
                  %272 = vst [vmem:[%s270] sm:$0xff] %v271
                  %v273 = vld [vmem:[%s269 + $0x10] sm:$0xff]
                  %274 = vst [vmem:[%s270 + $0x8] sm:$0xff] %v273
                  %v275 = vld [vmem:[%s269 + $0x20] sm:$0xff]
                  %276 = vst [vmem:[%s270 + $0x10] sm:$0xff] %v275
                $region72: #{tpu_custom_call.1} parent=66 // loop_footer
                  %s268 = sadd.s32 1, %s264
                $region73: #{tpu_custom_call.1} parent=66 // loop_footer_branch
                  %263 = sbr.rel target = $region69
                $region74: #{tpu_custom_call.1} parent=66 // loop_exit
                  _
              $region67: #{tpu_custom_call.1} parent=51 // pred_fallthru
                _
              // Predicated region
              $region75: #{tpu_custom_call.1} parent=51 // pred_check
                _
              $region76: #{tpu_custom_call.1} parent=51 // pred_check_branch
                %278 = sbr.rel target = $region78
              $region77: #{tpu_custom_call.1} parent=51 // pred_region
                _
              $region78: #{tpu_custom_call.1} parent=51 // pred_fallthru
                _
            $region52: #{tpu_custom_call.1} parent=47 // pred_fallthru
              _
            // Predicated region
            $region53: #{tpu_custom_call.1} parent=47 // pred_check
              _
            $region54: #{tpu_custom_call.1} parent=47 // pred_check_branch
              %245 = sbr.rel target = $region56
            $region55: #{tpu_custom_call.1} parent=47 // pred_region
              loop: start=0, step=1, limit=1
              $region57: #{tpu_custom_call.1} parent=55 // loop_pre_header
                _
              $region58: #{tpu_custom_call.1} parent=55 // loop_header
                %s248 = sphi 0, %s252
                %p249 = scmp.ge.s32.totalorder %s248, 1
                %s253 = sphi %s239, %s239
                %s254 = sphi %s237, %s237
              $region59: #{tpu_custom_call.1} parent=55 // loop_header_branch
                %251 = sbr.rel (%p249) target = $region63
              $region60: #{tpu_custom_call.1} parent=55 // loop_body
                %v255 = vld [vmem:[%s253] sm:$0xff]
                %256 = vst [vmem:[%s254] sm:$0xff] %v255
                %v257 = vld [vmem:[%s253 + $0x10] sm:$0xff]
                %258 = vst [vmem:[%s254 + $0x8] sm:$0xff] %v257
                %v259 = vld [vmem:[%s253 + $0x20] sm:$0xff]
                %260 = vst [vmem:[%s254 + $0x10] sm:$0xff] %v259
              $region61: #{tpu_custom_call.1} parent=55 // loop_footer
                %s252 = sadd.s32 1, %s248
              $region62: #{tpu_custom_call.1} parent=55 // loop_footer_branch
                %247 = sbr.rel target = $region58
              $region63: #{tpu_custom_call.1} parent=55 // loop_exit
                _
            $region56: #{tpu_custom_call.1} parent=47 // pred_fallthru
              _
          $region48: #{tpu_custom_call.1} parent=43 // pred_fallthru
            _
          %279 = vnop
        $region44: #{tpu_custom_call.1} parent=39 // pred_fallthru
          _
      $region40: #{tpu_custom_call.1} parent=5 // pred_fallthru
        _
      %p280 = scmp.le.s32.totalorder 1, %s16
      %p281 = scmp.lt.s32.totalorder %s16, 3
      %p282 = pnand %p280, %p281
      %p283 = pneg %p282
      // Predicated region
      $region79: #{tpu_custom_call.1} parent=5 // pred_check
        _
      $region80: #{tpu_custom_call.1} parent=5 // pred_check_branch
        %285 = sbr.rel (%p282) target = $region82
      $region81: #{tpu_custom_call.1} parent=5 // pred_region
        %s286 = ssub.s32 %s16, 1
        %s287 = sand.u32 %s29, 1
        %s288 = sand.u32 %s29, 1
        %s289 = smul.addr %s288, 24
        %s290 = scalar_lea.vmem [#allocation2], %s289
        // Predicated region
        $region83: #{tpu_custom_call.1} parent=81 // pred_check
          %p291 = pneg %p42
        $region84: #{tpu_custom_call.1} parent=81 // pred_check_branch
          %293 = sbr.rel (%p291) target = $region86
        $region85: #{tpu_custom_call.1} parent=81 // pred_region
          _
        $region86: #{tpu_custom_call.1} parent=81 // pred_fallthru
          _
        %s294 = sand.u32 %s29, 1
        %s295 = sand.u32 %s29, 1
        %s296 = smul.addr %s295, 24
        %s297 = scalar_lea.vmem [#allocation2], %s296
        %p298 = pneg %p42
        %p299 = pneg %p39
        %p300 = pneg %p63
        %p301 = pneg %p60
        %p302 = pneg %p84
        %p303 = pneg %p81
        %p304 = pneg %p105
        %p305 = pneg %p102
        %p306 = pneg %p126
        %p307 = pneg %p123
        %p308 = pneg %p147
        %p309 = pneg %p144
        %p310 = pneg %p168
        %p311 = pneg %p165
        %p312 = pneg %p194
        %p313 = pneg %p191
        %s314 = sand.u32 %s181, 1
        %s315 = scalar_lea.sflag [#allocation4], %s314
        %s316 = sand.u32 %s181, 1
        %s317 = smul.addr %s316, 2
        %s318 = scalar_lea.vmem [#allocation3], %s317
        %v319 = vld [vmem:[%s290] sm:$0xff]
        %v320 = vld [vmem:[%s290 + $0x8] sm:$0xff]
        %v321 = vld [vmem:[%s290 + $0x10] sm:$0x7f]
        %v322 = vld [vmem:[%s1] sm:$0xff]
        %v323 = vld [vmem:[%s1 + $0x8] sm:$0xff]
        %v324 = vld [vmem:[%s1 + $0x10] sm:$0xff]
        %v325 = vld [vmem:[%s1 + $0x18] sm:$0x3f]
        %v326 = vld [vmem:[%s2] sm:$0xff]
        %v327 = vld [vmem:[%s2 + $0x8] sm:$0xff]
        %v328 = vld [vmem:[%s2 + $0x10] sm:$0xff]
        %v329 = vld [vmem:[%s2 + $0x18] sm:$0x3f]
        %331 = vset.pattern.permute.xlu0 0
        %332 = vperm.xlu0 %331, %v326
        %v333 = vpop.permute.xlu0 %332
        %336 = vset.pattern.permute.xlu0 0
        %337 = vperm.xlu0 %336, %v327
        %v338 = vpop.permute.xlu0 %337
        %341 = vset.pattern.permute.xlu0 0
        %342 = vperm.xlu0 %341, %v328
        %v343 = vpop.permute.xlu0 %342
        %346 = vset.pattern.permute.xlu0 0
        %347 = vperm.xlu0 %346, %v329
        %v348 = vpop.permute.xlu0 %347
        %vm350 = vcmask 187392
        %v352 = vsel %vm350, %v322, 0
        %v355 = vsel %vm350, %v323, 0
        %v358 = vsel %vm350, %v324, 0
        %v361 = vsel %vm350, %v325, 0
        %vm363 = vcmask 1046528
        %v365 = vsel %vm363, %v321, 0
        %367 = vmatprep.subr.mxu0 0.0
        %368 = vmatpush1.msra.mxu0 %v319
        %369 = vmatprep.subr.mxu0 0.0
        %370 = vmatpush1.msra.mxu0 %v320
        %371 = vmatprep.subr.mxu0 0.0
        %372 = vmatpush1.msra.mxu0 %v365
        %373 = vmatprep.subr.mxu0 0.0
        %374 = vmatpush1.msra.mxu0 0.0
        %375 = vmatprep.subr.mxu0 0.0
        %376 = vmatpush1.msra.mxu0 0.0
        %377 = vmatprep.subr.mxu0 0.0
        %378 = vmatpush1.msra.mxu0 0.0
        %379 = vmatprep.subr.mxu0 0.0
        %380 = vmatpush1.msra.mxu0 0.0
        %381 = vmatprep.subr.mxu0 0.0
        %382 = vmatpush1.msra.mxu0 0.0
        %383 = vmatprep.subr.mxu0 0.0
        %384 = vmatpush1.msra.mxu0 0.0
        %385 = vmatprep.subr.mxu0 0.0
        %386 = vmatpush1.msra.mxu0 0.0
        %387 = vmatprep.subr.mxu0 0.0
        %388 = vmatpush1.msra.mxu0 0.0
        %389 = vmatprep.subr.mxu0 0.0
        %390 = vmatpush1.msra.mxu0 0.0
        %391 = vmatprep.subr.mxu0 0.0
        %392 = vmatpush1.msra.mxu0 0.0
        %393 = vmatprep.subr.mxu0 0.0
        %394 = vmatpush1.msra.mxu0 0.0
        %395 = vmatprep.subr.mxu0 0.0
        %396 = vmatpush1.msra.mxu0 0.0
        %397 = vmatprep.subr.mxu0 0.0
        %398 = vmatpush1.msra.mxu0 0.0
        %399 = vmatprep.subr.mxu0 0.0
        %400 = vmatpush1.msra.mxu0 0.0
        %401 = vmatprep.subr.mxu0 0.0
        %402 = vmatpush1.msra.mxu0 0.0
        %403 = vmatprep.subr.mxu0 0.0
        %404 = vmatpush1.msra.mxu0 0.0
        %405 = vmatprep.subr.mxu0 0.0
        %406 = vmatpush1.msra.mxu0 0.0
        %407 = vmatprep.subr.mxu0 0.0
        %408 = vmatpush1.msra.mxu0 0.0
        %409 = vmatprep.subr.mxu0 0.0
        %410 = vmatpush1.msra.mxu0 0.0
        %411 = vmatprep.subr.mxu0 0.0
        %412 = vmatpush1.msra.mxu0 0.0
        %413 = vmatprep.subr.mxu0 0.0
        %414 = vmatpush1.msra.mxu0 0.0
        %415 = vmatprep.subr.mxu0 0.0
        %416 = vmatpush1.msra.mxu0 0.0
        %417 = vmatprep.subr.mxu0 0.0
        %418 = vmatpush1.msra.mxu0 0.0
        %419 = vmatprep.subr.mxu0 0.0
        %420 = vmatpush1.msra.mxu0 0.0
        %421 = vmatprep.subr.mxu0 0.0
        %422 = vmatpush1.msra.mxu0 0.0
        %423 = vmatprep.subr.mxu0 0.0
        %424 = vmatpush1.msra.mxu0 0.0
        %425 = vmatprep.subr.mxu0 0.0
        %426 = vmatpush1.msra.mxu0 0.0
        %427 = vmatprep.subr.mxu0 0.0
        %428 = vmatpush1.msra.mxu0 0.0
        %429 = vmatprep.subr.mxu0 0.0
        %430 = vmatpush1.msra.mxu0 0.0
        %431 = vmatprep.mubr.f32.mxu0 0.0
        %432 = vmatmul.mubr.f32.gmra.mrb[0].mxu0 %v352
        %v433 = vpop.f32.mrb[0].mxu0
        %v434 = vadd.f32 %v333, %v433
        %v435 = vpop.f32.mrb[0].mxu0
        %436 = vmatprep.mubr.f32.mxu0 0.0
        %437 = vmatmul.mubr.f32.gmra.mrb[0].mxu0 %v355
        %v438 = vpop.f32.mrb[0].mxu0
        %v439 = vadd.f32 %v338, %v438
        %v440 = vpop.f32.mrb[0].mxu0
        %441 = vmatprep.mubr.f32.mxu0 0.0
        %442 = vmatmul.mubr.f32.gmra.mrb[0].mxu0 %v358
        %v443 = vpop.f32.mrb[0].mxu0
        %v444 = vadd.f32 %v343, %v443
        %v445 = vpop.f32.mrb[0].mxu0
        %446 = vmatprep.mubr.f32.mxu0 0.0
        %447 = vmatmul.mubr.f32.gmra.mrb[0].mxu0 %v361
        %v448 = vpop.f32.mrb[0].mxu0
        %v449 = vadd.f32 %v348, %v448
        %v450 = vpop.f32.mrb[0].mxu0
        %451 = vdwg.mxu0
        %v452 = vmax.f32 %v434, 0.0
        %v453 = vmax.f32 %v439, 0.0
        %v454 = vmax.f32 %v444, 0.0
        %v455 = vmax.f32 %v449, 0.0
        %v456 = vld [vmem:[%s3] sm:$0xff]
        %v457 = vld [vmem:[%s3 + $0x8] sm:$0x3]
        %v458 = vld [vmem:[%s4] sm:$0xff]
        %v459 = vld [vmem:[%s4 + $0x8] sm:$0x3]
        %461 = vset.pattern.permute.xlu0 0
        %462 = vperm.xlu0 %461, %v458
        %v463 = vpop.permute.xlu0 %462
        %466 = vset.pattern.permute.xlu0 0
        %467 = vperm.xlu0 %466, %v459
        %v468 = vpop.permute.xlu0 %467
        %vm470 = vcmask 244736
        %v472 = vsel %vm470, %v456, 0
        %v475 = vsel %vm470, %v457, 0
        %vm477 = vcmask 1045504
        %v479 = vsel %vm477, %v455, 0
        %481 = vmatprep.subr.mxu0 0.0
        %482 = vmatpush1.msra.mxu0 %v452
        %483 = vmatprep.subr.mxu0 0.0
        %484 = vmatpush1.msra.mxu0 %v453
        %485 = vmatprep.subr.mxu0 0.0
        %486 = vmatpush1.msra.mxu0 %v454
        %487 = vmatprep.subr.mxu0 0.0
        %488 = vmatpush1.msra.mxu0 %v479
        %489 = vmatprep.subr.mxu0 0.0
        %490 = vmatpush1.msra.mxu0 0.0
        %491 = vmatprep.subr.mxu0 0.0
        %492 = vmatpush1.msra.mxu0 0.0
        %493 = vmatprep.subr.mxu0 0.0
        %494 = vmatpush1.msra.mxu0 0.0
        %495 = vmatprep.subr.mxu0 0.0
        %496 = vmatpush1.msra.mxu0 0.0
        %497 = vmatprep.subr.mxu0 0.0
        %498 = vmatpush1.msra.mxu0 0.0
        %499 = vmatprep.subr.mxu0 0.0
        %500 = vmatpush1.msra.mxu0 0.0
        %501 = vmatprep.subr.mxu0 0.0
        %502 = vmatpush1.msra.mxu0 0.0
        %503 = vmatprep.subr.mxu0 0.0
        %504 = vmatpush1.msra.mxu0 0.0
        %505 = vmatprep.subr.mxu0 0.0
        %506 = vmatpush1.msra.mxu0 0.0
        %507 = vmatprep.subr.mxu0 0.0
        %508 = vmatpush1.msra.mxu0 0.0
        %509 = vmatprep.subr.mxu0 0.0
        %510 = vmatpush1.msra.mxu0 0.0
        %511 = vmatprep.subr.mxu0 0.0
        %512 = vmatpush1.msra.mxu0 0.0
        %513 = vmatprep.subr.mxu0 0.0
        %514 = vmatpush1.msra.mxu0 0.0
        %515 = vmatprep.subr.mxu0 0.0
        %516 = vmatpush1.msra.mxu0 0.0
        %517 = vmatprep.subr.mxu0 0.0
        %518 = vmatpush1.msra.mxu0 0.0
        %519 = vmatprep.subr.mxu0 0.0
        %520 = vmatpush1.msra.mxu0 0.0
        %521 = vmatprep.subr.mxu0 0.0
        %522 = vmatpush1.msra.mxu0 0.0
        %523 = vmatprep.subr.mxu0 0.0
        %524 = vmatpush1.msra.mxu0 0.0
        %525 = vmatprep.subr.mxu0 0.0
        %526 = vmatpush1.msra.mxu0 0.0
        %527 = vmatprep.subr.mxu0 0.0
        %528 = vmatpush1.msra.mxu0 0.0
        %529 = vmatprep.subr.mxu0 0.0
        %530 = vmatpush1.msra.mxu0 0.0
        %531 = vmatprep.subr.mxu0 0.0
        %532 = vmatpush1.msra.mxu0 0.0
        %533 = vmatprep.subr.mxu0 0.0
        %534 = vmatpush1.msra.mxu0 0.0
        %535 = vmatprep.subr.mxu0 0.0
        %536 = vmatpush1.msra.mxu0 0.0
        %537 = vmatprep.subr.mxu0 0.0
        %538 = vmatpush1.msra.mxu0 0.0
        %539 = vmatprep.subr.mxu0 0.0
        %540 = vmatpush1.msra.mxu0 0.0
        %541 = vmatprep.subr.mxu0 0.0
        %542 = vmatpush1.msra.mxu0 0.0
        %543 = vmatprep.subr.mxu0 0.0
        %544 = vmatpush1.msra.mxu0 0.0
        %545 = vmatprep.mubr.f32.mxu0 0.0
        %546 = vmatmul.mubr.f32.gmra.mrb[0].mxu0 %v472
        %v547 = vpop.f32.mrb[0].mxu0
        %v548 = vadd.f32 %v463, %v547
        %v549 = vpop.f32.mrb[0].mxu0
        %550 = vmatprep.mubr.f32.mxu0 0.0
        %551 = vmatmul.mubr.f32.gmra.mrb[0].mxu0 %v475
        %v552 = vpop.f32.mrb[0].mxu0
        %v553 = vadd.f32 %v468, %v552
        %v554 = vpop.f32.mrb[0].mxu0
        %555 = vdwg.mxu0
        %v556 = vmax.f32 %v548, 0.0
        %v557 = vmax.f32 %v553, 0.0
        %v558 = vld [vmem:[%s5] sm:$0x3]
        %v559 = vld [vmem:[%s6] sm:$0x3]
        %561 = vset.pattern.permute.xlu0 0
        %562 = vperm.xlu0 %561, %v559
        %v563 = vpop.permute.xlu0 %562
        %vm565 = vcmask 80896
        %v567 = vsel %vm565, %v558, 0
        %vm569 = vcmask 1041408
        %v571 = vsel %vm569, %v557, 0
        %573 = vmatprep.subr.mxu0 0.0
        %574 = vmatpush1.msra.mxu0 %v556
        %575 = vmatprep.subr.mxu0 0.0
        %576 = vmatpush1.msra.mxu0 %v571
        %577 = vmatprep.subr.mxu0 0.0
        %578 = vmatpush1.msra.mxu0 0.0
        %579 = vmatprep.subr.mxu0 0.0
        %580 = vmatpush1.msra.mxu0 0.0
        %581 = vmatprep.subr.mxu0 0.0
        %582 = vmatpush1.msra.mxu0 0.0
        %583 = vmatprep.subr.mxu0 0.0
        %584 = vmatpush1.msra.mxu0 0.0
        %585 = vmatprep.subr.mxu0 0.0
        %586 = vmatpush1.msra.mxu0 0.0
        %587 = vmatprep.subr.mxu0 0.0
        %588 = vmatpush1.msra.mxu0 0.0
        %589 = vmatprep.subr.mxu0 0.0
        %590 = vmatpush1.msra.mxu0 0.0
        %591 = vmatprep.subr.mxu0 0.0
        %592 = vmatpush1.msra.mxu0 0.0
        %593 = vmatprep.subr.mxu0 0.0
        %594 = vmatpush1.msra.mxu0 0.0
        %595 = vmatprep.subr.mxu0 0.0
        %596 = vmatpush1.msra.mxu0 0.0
        %597 = vmatprep.subr.mxu0 0.0
        %598 = vmatpush1.msra.mxu0 0.0
        %599 = vmatprep.subr.mxu0 0.0
        %600 = vmatpush1.msra.mxu0 0.0
        %601 = vmatprep.subr.mxu0 0.0
        %602 = vmatpush1.msra.mxu0 0.0
        %603 = vmatprep.subr.mxu0 0.0
        %604 = vmatpush1.msra.mxu0 0.0
        %605 = vmatprep.subr.mxu0 0.0
        %606 = vmatpush1.msra.mxu0 0.0
        %607 = vmatprep.subr.mxu0 0.0
        %608 = vmatpush1.msra.mxu0 0.0
        %609 = vmatprep.subr.mxu0 0.0
        %610 = vmatpush1.msra.mxu0 0.0
        %611 = vmatprep.subr.mxu0 0.0
        %612 = vmatpush1.msra.mxu0 0.0
        %613 = vmatprep.subr.mxu0 0.0
        %614 = vmatpush1.msra.mxu0 0.0
        %615 = vmatprep.subr.mxu0 0.0
        %616 = vmatpush1.msra.mxu0 0.0
        %617 = vmatprep.subr.mxu0 0.0
        %618 = vmatpush1.msra.mxu0 0.0
        %619 = vmatprep.subr.mxu0 0.0
        %620 = vmatpush1.msra.mxu0 0.0
        %621 = vmatprep.subr.mxu0 0.0
        %622 = vmatpush1.msra.mxu0 0.0
        %623 = vmatprep.subr.mxu0 0.0
        %624 = vmatpush1.msra.mxu0 0.0
        %625 = vmatprep.subr.mxu0 0.0
        %626 = vmatpush1.msra.mxu0 0.0
        %627 = vmatprep.subr.mxu0 0.0
        %628 = vmatpush1.msra.mxu0 0.0
        %629 = vmatprep.subr.mxu0 0.0
        %630 = vmatpush1.msra.mxu0 0.0
        %631 = vmatprep.subr.mxu0 0.0
        %632 = vmatpush1.msra.mxu0 0.0
        %633 = vmatprep.subr.mxu0 0.0
        %634 = vmatpush1.msra.mxu0 0.0
        %635 = vmatprep.subr.mxu0 0.0
        %636 = vmatpush1.msra.mxu0 0.0
        %637 = vmatprep.mubr.f32.mxu0 0.0
        %638 = vmatmul.mubr.f32.gmra.mrb[0].mxu0 %v567
        %v639 = vpop.f32.mrb[0].mxu0
        %v640 = vadd.f32 %v563, %v639
        %v641 = vpop.f32.mrb[0].mxu0
        %642 = vdwg.mxu0
        %643 = vst [vmem:[%s318] sm:$0x3] %v640
        %s644 = sand.u32 %s181, 1
        %s645 = scalar_lea.sflag [#allocation4], %s644
        %s646 = sand.u32 %s181, 1
        %s647 = smul.addr %s646, 2
        %s648 = scalar_lea.vmem [#allocation3], %s647
        // Predicated region
        $region87: #{tpu_custom_call.1} parent=81 // pred_check
          %p649 = pneg %p191
        $region88: #{tpu_custom_call.1} parent=81 // pred_check_branch
          %651 = sbr.rel (%p649) target = $region90
        $region89: #{tpu_custom_call.1} parent=81 // pred_region
          %s653 = ssub.s32 32, 32
          %654 = vsyncadd %s645, %s653
          %s655 = smul.addr %s21, 32
          %s656 = scalar_lea.hbm %s7, %s655
          %s658 = sshll.u32 %s648, 4
          %s659 = int_to_ptr.vmem [resolvable:$true] %s658
          %661 = dma.vmem_to_hbm [thread:$0]  %s659, 32, %s656, %s645
        $region90: #{tpu_custom_call.1} parent=81 // pred_fallthru
          _
      $region82: #{tpu_custom_call.1} parent=5 // pred_fallthru
        _
      %p662 = scmp.le.s32.totalorder 2, %s16
      // Predicated region
      $region91: #{tpu_custom_call.1} parent=5 // pred_check
        %p663 = pneg %p662
      $region92: #{tpu_custom_call.1} parent=5 // pred_check_branch
        %665 = sbr.rel (%p663) target = $region94
      $region93: #{tpu_custom_call.1} parent=5 // pred_region
        %s666 = ssub.s32 %s16, 2
        // Predicated region
        $region95: #{tpu_custom_call.1} parent=93 // pred_check
          %p667 = pneg %p197
        $region96: #{tpu_custom_call.1} parent=93 // pred_check_branch
          %669 = sbr.rel (%p667) target = $region98
        $region97: #{tpu_custom_call.1} parent=93 // pred_region
          %s670 = sand.u32 %s182, 1
          %s671 = scalar_lea.sflag [#allocation4], %s670
          %s672 = sand.u32 %s182, 1
          %s673 = smul.addr %s672, 2
          %s674 = scalar_lea.vmem [#allocation3], %s673
          %675 = dma.done %s671, 32
        $region98: #{tpu_custom_call.1} parent=93 // pred_fallthru
          _
      $region94: #{tpu_custom_call.1} parent=5 // pred_fallthru
        _
    $region6: #{tpu_custom_call.1} parent=1 // loop_footer
      %s20 = sadd.s32 1, %s16
    $region7: #{tpu_custom_call.1} parent=1 // loop_footer_branch
      %15 = sbr.rel target = $region3
    $region8: #{tpu_custom_call.1} parent=1 // loop_exit
      _
    %676 = vsyncpa [#allocation4], 1
    %s677 = scalar_lea.sflag [#allocation4], 1
    %678 = vsyncpa %s677, 1

</llo_original>
